<compile_context>
chip_gen: v5e
topology: v5e:2x2
jax: 0.10.0
libtpu: 0.0.40
codegen_flags: <defaults>
</compile_context>

<pallas_src>
import jax
import jax.numpy as jnp
from jax import lax
from jax.experimental import pallas as pl
from jax.experimental.pallas import tpu as pltpu


def _prsimclr_kernel(h_ref, w1_ref, w2_ref, o_ref, acc_ref):
    # h_ref  : (tile_b, F)        batch tile (invariant along k -> not re-DMA'd)
    # w1_ref : (tile_k, F)        rows k*tk:(k+1)*tk of W1 (PyTorch (out, in))
    # w2_ref : (P_pad, tile_k)    cols k*tk:(k+1)*tk of lane-padded W2
    # o_ref  : (tile_b, P_pad)    output tile (resident across k)
    # acc_ref: (tile_b, P_pad) f32 accumulator scratch
    k = pl.program_id(1)

    @pl.when(k == 0)
    def _init():
        acc_ref[...] = jnp.zeros_like(acc_ref)

    # First linear: z1_chunk = h_tile @ W1[k*tk:(k+1)*tk, :]^T  -> (tile_b, tk)
    z1 = lax.dot_general(
        h_ref[...], w1_ref[...],
        dimension_numbers=(((1,), (1,)), ((), ())),
        preferred_element_type=jnp.float32)
    z1 = jnp.maximum(z1, 0.0)  # ReLU in f32 on the VPU

    # Second linear: acc += z1_chunk @ W2[:, k*tk:(k+1)*tk]^T -> (tile_b, P_pad)
    acc_ref[...] += lax.dot_general(
        z1.astype(w2_ref.dtype), w2_ref[...],
        dimension_numbers=(((1,), (1,)), ((), ())),
        preferred_element_type=jnp.float32)

    @pl.when(k == pl.num_programs(1) - 1)
    def _finalize():
        o_ref[...] = acc_ref[...].astype(o_ref.dtype)


def _pick_batch_tile(B):
    tile_b = min(B, 256)                       # MXU-sized M tile
    if B > 8 and pl.cdiv(B, tile_b) < 2:
        # Split into at least 2 batch tiles so megacore / pipelining can overlap.
        tile_b = max(8, (((B + 1) // 2 + 7) // 8) * 8)
    return tile_b


def _pick_k_tile(F):
    if F % 128 != 0:
        return F                               # must equal the full dim then
    for cand in (512, 256, 128):
        if F % cand == 0:
            return min(cand, F)
    return F


def prsimclr_forward(h, w1, w2, *, tile_b=None, tile_k=None):
    """h: (B, F); w1: (F, F) PyTorch (out, in); w2: (P, F) PyTorch (out, in)."""
    B, F = h.shape
    P, F2 = w2.shape
    assert w1.shape == (F, F) and F2 == F

    # Lane-pad projection dim to a multiple of 128 (zero rows of W2); padded
    # output columns are zero and get sliced off below.
    P_pad = max(128, ((P + 127) // 128) * 128)
    w2_p = w2 if P_pad == P else jnp.pad(w2, ((0, P_pad - P), (0, 0)))

    if tile_b is None:
        tile_b = _pick_batch_tile(B)
    if tile_k is None:
        tile_k = _pick_k_tile(F)
    assert F % tile_k == 0, "tile_k must divide n_features"

    grid = (pl.cdiv(B, tile_b), F // tile_k)

    itemsize = jnp.dtype(h.dtype).itemsize
    cost = pl.CostEstimate(
        flops=2 * B * F * F + 2 * B * F * P_pad,
        transcendentals=0,
        bytes_accessed=(B * F + F * F + P_pad * F + B * P_pad) * itemsize)

    # VMEM budget: double-buffered blocks + f32 accumulator, with headroom.
    vmem_budget = int(
        1.5 * 2 * (tile_b * F + tile_k * F + P_pad * tile_k + tile_b * P_pad)
        * itemsize + tile_b * P_pad * 4) + (2 << 20)
    vmem_budget = max(16 << 20, min(vmem_budget, 64 << 20))

    out = pl.pallas_call(
        _prsimclr_kernel,
        out_shape=jax.ShapeDtypeStruct((B, P_pad), h.dtype),
        grid_spec=pltpu.PrefetchScalarGridSpec(
            num_scalar_prefetch=0,
            grid=grid,
            in_specs=[
                pl.BlockSpec((tile_b, F), lambda i, k: (i, 0)),
                pl.BlockSpec((tile_k, F), lambda i, k: (k, 0)),
                pl.BlockSpec((P_pad, tile_k), lambda i, k: (0, k)),
            ],
            out_specs=pl.BlockSpec((tile_b, P_pad), lambda i, k: (i, 0)),
            scratch_shapes=[pltpu.VMEM((tile_b, P_pad), jnp.float32)],
        ),
        compiler_params=pltpu.CompilerParams(
            dimension_semantics=("parallel", "arbitrary"),
            vmem_limit_bytes=vmem_budget),
        cost_estimate=cost,
    )(h, w1, w2_p)

    return out[:, :P] if P_pad != P else out


def _reference(h, w1, w2):
    z = h @ w1.T
    z = jnp.maximum(z, 0.0)
    return z @ w2.T


if __name__ == "__main__":
    key = jax.random.PRNGKey(0)

    # --- Main demo at the module's natural (small) shapes ---------------------
    batch, n_features, projection_dim = 8, 128, 64
    k_h, k_w1, k_w2, k2_h, k2_w1, k2_w2 = jax.random.split(key, 6)

    bound = 1.0 / jnp.sqrt(n_features)
    h = jax.random.normal(k_h, (batch, n_features), dtype=jnp.float32)
    w1 = jax.random.uniform(k_w1, (n_features, n_features),
                            minval=-bound, maxval=bound, dtype=jnp.float32)
    w2 = jax.random.uniform(k_w2, (projection_dim, n_features),
                            minval=-bound, maxval=bound, dtype=jnp.float32)

    z = jax.block_until_ready(prsimclr_forward(h, w1, w2))
    z_ref = _reference(h, w1, w2)
    assert z.shape == (batch, projection_dim)
    assert jnp.allclose(z, z_ref, atol=1e-5, rtol=1e-5), "mismatch vs reference"

    # --- Secondary check exercising batch tiling + K accumulation + pad -------
    B2, F2, P2 = 32, 256, 96
    bound2 = 1.0 / jnp.sqrt(F2)
    h2 = jax.random.normal(k2_h, (B2, F2), dtype=jnp.float32)
    w1b = jax.random.uniform(k2_w1, (F2, F2),
                             minval=-bound2, maxval=bound2, dtype=jnp.float32)
    w2b = jax.random.uniform(k2_w2, (P2, F2),
                             minval=-bound2, maxval=bound2, dtype=jnp.float32)
    z2 = jax.block_until_ready(
        prsimclr_forward(h2, w1b, w2b, tile_b=16, tile_k=128))
    z2_ref = _reference(h2, w1b, w2b)
    assert z2.shape == (B2, P2)
    assert jnp.allclose(z2, z2_ref, atol=1e-4, rtol=1e-4), "mismatch (tiled case)"

    print("KERNEL_OK")
</pallas_src>

<mosaic_0001>
module attributes {stable_mosaic.version = 11 : i64} {
  func.func @_prsimclr_kernel(%arg0: i32, %arg1: i32, %arg2: memref<8x128xf32, #tpu.memory_space<vmem>>, %arg3: memref<128x128xf32, #tpu.memory_space<vmem>>, %arg4: memref<128x128xf32, #tpu.memory_space<vmem>>, %arg5: memref<8x128xf32, #tpu.memory_space<vmem>>, %arg6: memref<8x128xf32, #tpu.memory_space<vmem>>) attributes {dimension_semantics = [#tpu.dimension_semantics<parallel>, #tpu.dimension_semantics<arbitrary>], iteration_bounds = array<i64: 1, 1>, scalar_prefetch = 0 : i64, scratch_operands = 1 : i64, tpu.core_type = #tpu.core_type<tc>, window_params = [{transform_indices = @transform_0, window_bounds = array<i64: 8, 128>}, {transform_indices = @transform_1, window_bounds = array<i64: 128, 128>}, {transform_indices = @transform_2, window_bounds = array<i64: 128, 128>}, {transform_indices = @transform_3, window_bounds = array<i64: 8, 128>}]} {
    %c0_i32 = arith.constant 0 : i32
    %0 = arith.cmpi eq, %arg1, %c0_i32 : i32
    %1 = arith.extui %0 : i1 to i32
    %c0_i32_0 = arith.constant 0 : i32
    %2 = arith.cmpi ne, %1, %c0_i32_0 : i32
    scf.if %2 {
      %cst_14 = arith.constant 0.000000e+00 : f32
      %16 = vector.broadcast %cst_14 : f32 to vector<8x128xf32>
      %c0_15 = arith.constant 0 : index
      %c0_16 = arith.constant 0 : index
      %17 = vector.load %arg6[%c0_15, %c0_16] : memref<8x128xf32, #tpu.memory_space<vmem>>, vector<8x128xf32>
      tpu.vector_store %arg6[%c0_15, %c0_16], %16 {strides = array<i32>} : memref<8x128xf32, #tpu.memory_space<vmem>>, vector<8x128xf32>,
    } else {
    }
    %c0 = arith.constant 0 : index
    %c0_1 = arith.constant 0 : index
    %3 = vector.load %arg2[%c0, %c0_1] : memref<8x128xf32, #tpu.memory_space<vmem>>, vector<8x128xf32>
    %c0_2 = arith.constant 0 : index
    %c0_3 = arith.constant 0 : index
    %4 = vector.load %arg3[%c0_2, %c0_3] : memref<128x128xf32, #tpu.memory_space<vmem>>, vector<128x128xf32>
    %cst = arith.constant dense<0.000000e+00> : vector<8x128xf32>
    %5 = tpu.matmul %3, %4, %cst {dimension_numbers = #tpu.dot_dimension_numbers<[1], [1], [0], [0], [0, 0, 1, 0], [], []>} : vector<8x128xf32>, vector<128x128xf32>, vector<8x128xf32> -> vector<8x128xf32>
    %cst_4 = arith.constant 0.000000e+00 : f32
    %6 = vector.broadcast %cst_4 : f32 to vector<8x128xf32>
    %7 = arith.maximumf %5, %6 : vector<8x128xf32>
    %c0_5 = arith.constant 0 : index
    %c0_6 = arith.constant 0 : index
    %8 = vector.load %arg6[%c0_5, %c0_6] : memref<8x128xf32, #tpu.memory_space<vmem>>, vector<8x128xf32>
    %c0_7 = arith.constant 0 : index
    %c0_8 = arith.constant 0 : index
    %9 = vector.load %arg4[%c0_7, %c0_8] : memref<128x128xf32, #tpu.memory_space<vmem>>, vector<128x128xf32>
    %cst_9 = arith.constant dense<0.000000e+00> : vector<8x128xf32>
    %10 = tpu.matmul %7, %9, %cst_9 {dimension_numbers = #tpu.dot_dimension_numbers<[1], [1], [0], [0], [0, 0, 1, 0], [], []>} : vector<8x128xf32>, vector<128x128xf32>, vector<8x128xf32> -> vector<8x128xf32>
    %11 = arith.addf %8, %10 : vector<8x128xf32>
    %c0_10 = arith.constant 0 : index
    %c0_11 = arith.constant 0 : index
    %12 = vector.load %arg6[%c0_10, %c0_11] : memref<8x128xf32, #tpu.memory_space<vmem>>, vector<8x128xf32>
    tpu.vector_store %arg6[%c0_10, %c0_11], %11 {strides = array<i32>} : memref<8x128xf32, #tpu.memory_space<vmem>>, vector<8x128xf32>,
    %c0_i32_12 = arith.constant 0 : i32
    %13 = arith.cmpi eq, %arg1, %c0_i32_12 : i32
    %14 = arith.extui %13 : i1 to i32
    %c0_i32_13 = arith.constant 0 : i32
    %15 = arith.cmpi ne, %14, %c0_i32_13 : i32
    scf.if %15 {
      %c0_14 = arith.constant 0 : index
      %c0_15 = arith.constant 0 : index
      %16 = vector.load %arg6[%c0_14, %c0_15] : memref<8x128xf32, #tpu.memory_space<vmem>>, vector<8x128xf32>
      %c0_16 = arith.constant 0 : index
      %c0_17 = arith.constant 0 : index
      %17 = vector.load %arg5[%c0_16, %c0_17] : memref<8x128xf32, #tpu.memory_space<vmem>>, vector<8x128xf32>
      tpu.vector_store %arg5[%c0_16, %c0_17], %16 {strides = array<i32>} : memref<8x128xf32, #tpu.memory_space<vmem>>, vector<8x128xf32>,
    } else {
    }
    return
  }
  func.func @transform_0(%arg0: i32, %arg1: i32) -> (i32, i32) {
    %c0_i32 = arith.constant 0 : i32
    %c0_i32_0 = arith.constant 0 : i32
    return %arg0, %c0_i32 : i32, i32
  }
  func.func @transform_1(%arg0: i32, %arg1: i32) -> (i32, i32) {
    %c0_i32 = arith.constant 0 : i32
    %c0_i32_0 = arith.constant 0 : i32
    return %arg1, %c0_i32 : i32, i32
  }
  func.func @transform_2(%arg0: i32, %arg1: i32) -> (i32, i32) {
    %c0_i32 = arith.constant 0 : i32
    %c0_i32_0 = arith.constant 0 : i32
    return %c0_i32, %arg1 : i32, i32
  }
  func.func @transform_3(%arg0: i32, %arg1: i32) -> (i32, i32) {
    %c0_i32 = arith.constant 0 : i32
    %c0_i32_0 = arith.constant 0 : i32
    return %arg0, %c0_i32 : i32, i32
  }
}

</mosaic_0001>

<llo_original>
// kernel: tpu_custom_call.1
$region0: #{tpu_custom_call.1}
  #allocation0 [shape = 'u32[]', space=smem, size = 0x4, offset = 0x4, fixed_abs, tag = 'smem constant byte address 0x4 - core index']
  #allocation1 [shape = 'u32[72,128]{1,0:T(1,128)}', space=vmem, size = 0x9000, scoped, tag = 'internal scratch']
  #allocation2 [shape = 'f32[8,128]{1,0:T(8,128)}', space=vmem, size = 0x1000, scoped, tag = 'scratch operand']
  %s0 = inlined_call_operand.hbm [shape: f32[8,128], index: 0, kind: input, shape index: {}]
  %s1 = inlined_call_operand.hbm [shape: f32[128,128], index: 1, kind: input, shape index: {}]
  %s2 = inlined_call_operand.hbm [shape: f32[128,128], index: 2, kind: input, shape index: {}]
  %s3 = inlined_call_operand.hbm [shape: f32[8,128], index: 3, kind: output, shape index: {}]
  %s4 = sld [smem:[#allocation0]]
  $region42: #{tpu_custom_call.1} parent=0
    _
  %s6 = ssub.s32 1, %s4
  %s7 = scalar_select 0, %s6, %s4
  $region1: #{tpu_custom_call.1} parent=0
    #allocation3 [shape = 'u8[4096]{0}', space=vmem, size = 0x1000, scoped, tag = 'input window, operand 0, single buffered']
    #allocation4 [shape = 's32[1]{0}', space=sflag, size = 0x4, scoped, tag = 'scoped memory for tpu_custom_call.1']
    #allocation5 [shape = 's32[1]{0}', space=sflag, size = 0x4, scoped, tag = 'scoped memory for tpu_custom_call.1']
    #allocation6 [shape = 'u8[65536]{0}', space=vmem, size = 0x10000, scoped, tag = 'input window, operand 1, single buffered']
    #allocation7 [shape = 's32[1]{0}', space=sflag, size = 0x4, scoped, tag = 'scoped memory for tpu_custom_call.1']
    #allocation8 [shape = 'u8[65536]{0}', space=vmem, size = 0x10000, scoped, tag = 'input window, operand 2, single buffered']
    #allocation9 [shape = 'u8[4096]{0}', space=vmem, size = 0x1000, scoped, tag = 'output window, operand 0, single buffered']
    %8 = vsyncpa [#allocation4], 0
    %9 = vsyncpa [#allocation7], 0
    %10 = vsyncpa [#allocation5], 0
    // Predicated region
    $region2: #{tpu_custom_call.1} parent=1 // pred_check
      _
    $region3: #{tpu_custom_call.1} parent=1 // pred_check_branch
      %12 = sbr.rel (0) target = $region5
    $region4: #{tpu_custom_call.1} parent=1 // pred_region
      %14 = vsyncadd [#allocation4], 0
      %s16 = sshll.u32 %s0, 4
      %s17 = int_to_ptr.hbm [resolvable:$true] %s16
      %s18 = sshll.u32 [#allocation3], 4
      %s19 = int_to_ptr.vmem [resolvable:$true] %s18
      %21 = dma.hbm_to_vmem [thread:$0]  %s17, 128, %s19, [#allocation4]
    $region5: #{tpu_custom_call.1} parent=1 // pred_fallthru
      _
    // Predicated region
    $region6: #{tpu_custom_call.1} parent=1 // pred_check
      _
    $region7: #{tpu_custom_call.1} parent=1 // pred_check_branch
      %23 = sbr.rel (0) target = $region9
    $region8: #{tpu_custom_call.1} parent=1 // pred_region
      %25 = vsyncadd [#allocation7], 0
      %s26 = sshll.u32 %s1, 4
      %s27 = int_to_ptr.hbm [resolvable:$true] %s26
      %s28 = sshll.u32 [#allocation6], 4
      %s29 = int_to_ptr.vmem [resolvable:$true] %s28
      %34 = dma.hbm_to_vmem [thread:$0]  %s27, 2048, %s29, [#allocation7], 128, 128, 8
    $region9: #{tpu_custom_call.1} parent=1 // pred_fallthru
      _
    // Predicated region
    $region10: #{tpu_custom_call.1} parent=1 // pred_check
      _
    $region11: #{tpu_custom_call.1} parent=1 // pred_check_branch
      %36 = sbr.rel (0) target = $region13
    $region12: #{tpu_custom_call.1} parent=1 // pred_region
      %38 = vsyncadd [#allocation7], 0
      %s39 = sshll.u32 %s2, 4
      %s40 = int_to_ptr.hbm [resolvable:$true] %s39
      %s41 = sshll.u32 [#allocation8], 4
      %s42 = int_to_ptr.vmem [resolvable:$true] %s41
      %47 = dma.hbm_to_vmem [thread:$0]  %s40, 2048, %s42, [#allocation7], 128, 128, 8
    $region13: #{tpu_custom_call.1} parent=1 // pred_fallthru
      _
    // Predicated region
    $region14: #{tpu_custom_call.1} parent=1 // pred_check
      _
    $region15: #{tpu_custom_call.1} parent=1 // pred_check_branch
      %49 = sbr.rel (0) target = $region17
    $region16: #{tpu_custom_call.1} parent=1 // pred_region
      %51 = dma.done [#allocation4], 128
    $region17: #{tpu_custom_call.1} parent=1 // pred_fallthru
      _
    // Predicated region
    $region18: #{tpu_custom_call.1} parent=1 // pred_check
      _
    $region19: #{tpu_custom_call.1} parent=1 // pred_check_branch
      %53 = sbr.rel (0) target = $region21
    $region20: #{tpu_custom_call.1} parent=1 // pred_region
      %55 = dma.done [#allocation7], 2048
    $region21: #{tpu_custom_call.1} parent=1 // pred_fallthru
      _
    // Predicated region
    $region22: #{tpu_custom_call.1} parent=1 // pred_check
      _
    $region23: #{tpu_custom_call.1} parent=1 // pred_check_branch
      %57 = sbr.rel (0) target = $region25
    $region24: #{tpu_custom_call.1} parent=1 // pred_region
      %59 = dma.done [#allocation7], 2048
    $region25: #{tpu_custom_call.1} parent=1 // pred_fallthru
      _
    %p60 = scmp.eq.s32.totalorder 0, 0
    // Predicated region
    $region26: #{tpu_custom_call.1} parent=1 // pred_check
      %p61 = pneg %p60
    $region27: #{tpu_custom_call.1} parent=1 // pred_check_branch
      %63 = sbr.rel (%p61) target = $region29
    $region28: #{tpu_custom_call.1} parent=1 // pred_region
      %64 = vst [vmem:[#allocation2] sm:$0xff] 0.0
    $region29: #{tpu_custom_call.1} parent=1 // pred_fallthru
      _
    %v65 = vld [vmem:[#allocation3] sm:$0xff]
    %v66 = vld [vmem:[#allocation6] sm:$0xff]
    %v67 = vld [vmem:[#allocation6 + $0x8] sm:$0xff]
    %v68 = vld [vmem:[#allocation6 + $0x10] sm:$0xff]
    %v69 = vld [vmem:[#allocation6 + $0x18] sm:$0xff]
    %v70 = vld [vmem:[#allocation6 + $0x20] sm:$0xff]
    %v71 = vld [vmem:[#allocation6 + $0x28] sm:$0xff]
    %v72 = vld [vmem:[#allocation6 + $0x30] sm:$0xff]
    %v73 = vld [vmem:[#allocation6 + $0x38] sm:$0xff]
    %v74 = vld [vmem:[#allocation6 + $0x40] sm:$0xff]
    %v75 = vld [vmem:[#allocation6 + $0x48] sm:$0xff]
    %v76 = vld [vmem:[#allocation6 + $0x50] sm:$0xff]
    %v77 = vld [vmem:[#allocation6 + $0x58] sm:$0xff]
    %v78 = vld [vmem:[#allocation6 + $0x60] sm:$0xff]
    %v79 = vld [vmem:[#allocation6 + $0x68] sm:$0xff]
    %v80 = vld [vmem:[#allocation6 + $0x70] sm:$0xff]
    %v81 = vld [vmem:[#allocation6 + $0x78] sm:$0xff]
    %82 = vmatpush.xpose.msra.mxu0 %v81
    %83 = vmatpush.xpose.msra.mxu0 %v80
    %84 = vmatpush.xpose.msra.mxu0 %v79
    %85 = vmatpush.xpose.msra.mxu0 %v78
    %86 = vmatpush.xpose.msra.mxu0 %v77
    %87 = vmatpush.xpose.msra.mxu0 %v76
    %88 = vmatpush.xpose.msra.mxu0 %v75
    %89 = vmatpush.xpose.msra.mxu0 %v74
    %90 = vmatpush.xpose.msra.mxu0 %v73
    %91 = vmatpush.xpose.msra.mxu0 %v72
    %92 = vmatpush.xpose.msra.mxu0 %v71
    %93 = vmatpush.xpose.msra.mxu0 %v70
    %94 = vmatpush.xpose.msra.mxu0 %v69
    %95 = vmatpush.xpose.msra.mxu0 %v68
    %96 = vmatpush.xpose.msra.mxu0 %v67
    %97 = vmatpush.xpose.msra.mxu0 %v66
    %98 = vmatmul.f32.gmra.mxu0 %v65
    %v99 = vpop.f32.mrf.mxu0
    %v100 = vadd.f32 0.0, %v99
    %101 = vdwg.mxu0
    %v102 = vmax.f32 %v100, 0.0
    %v103 = vld [vmem:[#allocation2] sm:$0xff]
    %v104 = vld [vmem:[#allocation8] sm:$0xff]
    %v105 = vld [vmem:[#allocation8 + $0x8] sm:$0xff]
    %v106 = vld [vmem:[#allocation8 + $0x10] sm:$0xff]
    %v107 = vld [vmem:[#allocation8 + $0x18] sm:$0xff]
    %v108 = vld [vmem:[#allocation8 + $0x20] sm:$0xff]
    %v109 = vld [vmem:[#allocation8 + $0x28] sm:$0xff]
    %v110 = vld [vmem:[#allocation8 + $0x30] sm:$0xff]
    %v111 = vld [vmem:[#allocation8 + $0x38] sm:$0xff]
    %v112 = vld [vmem:[#allocation8 + $0x40] sm:$0xff]
    %v113 = vld [vmem:[#allocation8 + $0x48] sm:$0xff]
    %v114 = vld [vmem:[#allocation8 + $0x50] sm:$0xff]
    %v115 = vld [vmem:[#allocation8 + $0x58] sm:$0xff]
    %v116 = vld [vmem:[#allocation8 + $0x60] sm:$0xff]
    %v117 = vld [vmem:[#allocation8 + $0x68] sm:$0xff]
    %v118 = vld [vmem:[#allocation8 + $0x70] sm:$0xff]
    %v119 = vld [vmem:[#allocation8 + $0x78] sm:$0xff]
    %120 = vmatpush.xpose.msra.mxu0 %v119
    %121 = vmatpush.xpose.msra.mxu0 %v118
    %122 = vmatpush.xpose.msra.mxu0 %v117
    %123 = vmatpush.xpose.msra.mxu0 %v116
    %124 = vmatpush.xpose.msra.mxu0 %v115
    %125 = vmatpush.xpose.msra.mxu0 %v114
    %126 = vmatpush.xpose.msra.mxu0 %v113
    %127 = vmatpush.xpose.msra.mxu0 %v112
    %128 = vmatpush.xpose.msra.mxu0 %v111
    %129 = vmatpush.xpose.msra.mxu0 %v110
    %130 = vmatpush.xpose.msra.mxu0 %v109
    %131 = vmatpush.xpose.msra.mxu0 %v108
    %132 = vmatpush.xpose.msra.mxu0 %v107
    %133 = vmatpush.xpose.msra.mxu0 %v106
    %134 = vmatpush.xpose.msra.mxu0 %v105
    %135 = vmatpush.xpose.msra.mxu0 %v104
    %136 = vmatmul.f32.gmra.mxu0 %v102
    %v137 = vpop.f32.mrf.mxu0
    %v138 = vadd.f32 0.0, %v137
    %139 = vdwg.mxu0
    %v140 = vadd.f32 %v103, %v138
    %141 = vst [vmem:[#allocation2] sm:$0xff] %v140
    // Predicated region
    $region30: #{tpu_custom_call.1} parent=1 // pred_check
      %p142 = pneg %p60
    $region31: #{tpu_custom_call.1} parent=1 // pred_check_branch
      %144 = sbr.rel (%p142) target = $region33
    $region32: #{tpu_custom_call.1} parent=1 // pred_region
      %v145 = vld [vmem:[#allocation2] sm:$0xff]
      %146 = vst [vmem:[#allocation9] sm:$0xff] %v145
    $region33: #{tpu_custom_call.1} parent=1 // pred_fallthru
      _
    // Predicated region
    $region34: #{tpu_custom_call.1} parent=1 // pred_check
      _
    $region35: #{tpu_custom_call.1} parent=1 // pred_check_branch
      %148 = sbr.rel (0) target = $region37
    $region36: #{tpu_custom_call.1} parent=1 // pred_region
      %150 = vsyncadd [#allocation5], 0
      %s152 = sshll.u32 [#allocation9], 4
      %s153 = int_to_ptr.vmem [resolvable:$true] %s152
      %s154 = sshll.u32 %s3, 4
      %s155 = int_to_ptr.hbm [resolvable:$true] %s154
      %157 = dma.vmem_to_hbm [thread:$0]  %s153, 128, %s155, [#allocation5]
    $region37: #{tpu_custom_call.1} parent=1 // pred_fallthru
      _
    // Predicated region
    $region38: #{tpu_custom_call.1} parent=1 // pred_check
      _
    $region39: #{tpu_custom_call.1} parent=1 // pred_check_branch
      %159 = sbr.rel (0) target = $region41
    $region40: #{tpu_custom_call.1} parent=1 // pred_region
      %161 = dma.done [#allocation5], 128
    $region41: #{tpu_custom_call.1} parent=1 // pred_fallthru
      _
    %162 = vsyncpa [#allocation4], 1
    %163 = vsyncpa [#allocation7], 1
    %164 = vsyncpa [#allocation5], 1

</llo_original>
